<compile_context>
chip_gen: v6e
topology: v6e:2x2x1
jax: 0.10.0
libtpu: 0.0.40
codegen_flags: <defaults>
</compile_context>

<pallas_src>
import jax
import jax.numpy as jnp
from jax.experimental import pallas as pl
from jax.experimental.pallas import tpu as pltpu


def _round_up(a, b):
    return (a + b - 1) // b * b


def _make_kernel(*, kt, stride, dilation, pad, t, v, c_in, l_pad, build_slab):
    """Per-batch-element kernel. All tap geometry is static Python ints."""

    def _taps(get_tap, w_ref, scale_ref, shift_ref, o_ref):
        acc = None
        for k in range(kt):                       # static unroll
            r = (k * dilation) % stride           # phase of this tap
            q = (k * dilation) // stride          # row offset within phase
            tap = get_tap(r, q * v)               # (c_in, l_pad), bf16
            w_k = w_ref[:, k * c_in:(k + 1) * c_in]   # (c_out, c_in), bf16
            part = jnp.dot(w_k, tap, preferred_element_type=jnp.float32)
            acc = part if acc is None else acc + part
        # Fused conv-bias + eval-mode BatchNorm epilogue (f32), cast on store.
        o_ref[0] = (acc * scale_ref[...] + shift_ref[...]).astype(o_ref.dtype)

    if build_slab:
        # stride == 1: x_ref is the raw (1, C_in, T*V) input in its original
        # dtype straight from HBM.  Build the zero-padded bf16 slab in VMEM.
        def kernel(x_ref, w_ref, scale_ref, shift_ref, o_ref, slab_ref):
            lo = pad * v
            hi = lo + t * v
            l_in = slab_ref.shape[1]
            if lo > 0:
                slab_ref[:, :lo] = jnp.zeros((c_in, lo), slab_ref.dtype)
            if l_in > hi:
                slab_ref[:, hi:] = jnp.zeros((c_in, l_in - hi), slab_ref.dtype)
            slab_ref[:, lo:hi] = x_ref[0].astype(slab_ref.dtype)
            _taps(lambda r, c0: slab_ref[:, c0:c0 + l_pad],
                  w_ref, scale_ref, shift_ref, o_ref)
    else:
        # stride > 1: x_ref is the wrapper-built (1, stride, C_in, L_in) bf16
        # phase slab; every tap is a contiguous static lane slice of phase r.
        def kernel(x_ref, w_ref, scale_ref, shift_ref, o_ref):
            _taps(lambda r, c0: x_ref[0, r, :, c0:c0 + l_pad],
                  w_ref, scale_ref, shift_ref, o_ref)

    return kernel


def temporal_conv_forward(x, conv_w, conv_b, gamma, beta, run_mean, run_var,
                          *, stride=1, dilation=1, eps=1e-5,
                          compute_dtype=jnp.bfloat16,
                          out_dtype=jnp.bfloat16):
    """x: (N, C_in, T, V). conv_w: (C_out, C_in, kt, 1). Returns (N, C_out, T_out, V)."""
    n, c_in, t, v = x.shape
    c_out, c_in_w, kt, kw = conv_w.shape
    assert c_in_w == c_in and kw == 1, (conv_w.shape, x.shape)
    pad = (kt + (kt - 1) * (dilation - 1) - 1) // 2
    t_out = (t + 2 * pad - dilation * (kt - 1) - 1) // stride + 1
    assert t_out >= 1, "degenerate temporal output"
    l = t_out * v
    l_pad = _round_up(l, 128)                       # lane-dense output columns
    max_q = ((kt - 1) * dilation) // stride
    l_in = _round_up(max_q * v + l_pad, 128)        # slab lane width

    # im2col weights: (C_out, C_in, kt, 1) -> (C_out, kt*C_in); the C_in block
    # of tap k is contiguous so the kernel can slice it per tap.
    w2 = jnp.transpose(conv_w[:, :, :, 0], (0, 2, 1)).reshape(c_out, kt * c_in)
    w2 = w2.astype(compute_dtype)

    # Fold conv bias + inference BatchNorm into per-channel scale / shift.
    s = gamma / jnp.sqrt(run_var + eps)
    scale = s.reshape(c_out, 1).astype(jnp.float32)
    shift = (conv_b * s + beta - run_mean * s).reshape(c_out, 1).astype(jnp.float32)

    kernel = _make_kernel(kt=kt, stride=stride, dilation=dilation, pad=pad,
                          t=t, v=v, c_in=c_in, l_pad=l_pad,
                          build_slab=(stride == 1))

    if stride == 1:
        # Zero-copy path: metadata-only reshape, original dtype; the kernel
        # reads x from HBM exactly once and does padding + bf16 cast in VMEM.
        x_in = x.reshape(n, c_in, t * v)
        in_spec_x = pl.BlockSpec((1, c_in, t * v), lambda i: (i, 0, 0))
        scratch = [pltpu.VMEM((c_in, l_in), compute_dtype)]
    else:
        # Phase decomposition of the padded time axis (one fused wrapper op):
        # phase r holds padded times r, r+stride, ...; tap k becomes rows
        # [q_k, q_k+T_out) of phase r_k, i.e. a contiguous lane slice.
        t_ph = t_out + max_q
        t_total = stride * t_ph
        right_pad = max(0, t_total - t - pad)
        x_pad = jnp.pad(x, ((0, 0), (0, 0), (pad, right_pad), (0, 0)))
        x_pad = x_pad[:, :, :t_total, :]
        x_ph = x_pad.reshape(n, c_in, t_ph, stride, v)
        x_ph = jnp.transpose(x_ph, (0, 3, 1, 2, 4)).reshape(n, stride, c_in, t_ph * v)
        x_ph = jnp.pad(x_ph, ((0, 0), (0, 0), (0, 0), (0, l_in - t_ph * v)))
        x_in = x_ph.astype(compute_dtype)
        in_spec_x = pl.BlockSpec((1, stride, c_in, l_in), lambda i: (i, 0, 0, 0))
        scratch = []

    out = pl.pallas_call(
        kernel,
        out_shape=jax.ShapeDtypeStruct((n, c_out, l_pad), out_dtype),
        grid_spec=pltpu.PrefetchScalarGridSpec(
            num_scalar_prefetch=0,
            grid=(n,),
            in_specs=[
                in_spec_x,
                # constant blocks: block index never changes -> fetched once
                pl.BlockSpec((c_out, kt * c_in), lambda i: (0, 0)),
                pl.BlockSpec((c_out, 1), lambda i: (0, 0)),
                pl.BlockSpec((c_out, 1), lambda i: (0, 0)),
            ],
            out_specs=pl.BlockSpec((1, c_out, l_pad), lambda i: (i, 0, 0)),
            scratch_shapes=scratch,
        ),
        compiler_params=pltpu.CompilerParams(
            dimension_semantics=("parallel",)),
    )(x_in, w2, scale, shift)

    if l_pad != l:
        out = out[:, :, :l]
    return out.reshape(n, c_out, t_out, v)


def _reference(x, conv_w, conv_b, gamma, beta, run_mean, run_var,
               *, stride, dilation, eps=1e-5):
    kt = conv_w.shape[2]
    pad = (kt + (kt - 1) * (dilation - 1) - 1) // 2
    y = jax.lax.conv_general_dilated(
        x, conv_w,
        window_strides=(stride, 1),
        padding=((pad, pad), (0, 0)),
        rhs_dilation=(dilation, 1),
        dimension_numbers=("NCHW", "OIHW", "NCHW"),
        precision=jax.lax.Precision.HIGHEST,
    )
    y = y + conv_b[None, :, None, None]
    inv = 1.0 / jnp.sqrt(run_var + eps)
    return ((y - run_mean[None, :, None, None]) * inv[None, :, None, None]
            * gamma[None, :, None, None] + beta[None, :, None, None])


if __name__ == "__main__":
    # Small, module-consistent shapes (CTR-GCN uses V=20 joints):
    # TemporalConv(in_channels=4, out_channels=8, kernel_size=5)
    N, C_IN, T, V = 2, 4, 16, 20
    C_OUT, KT, DIL = 8, 5, 1

    key = jax.random.PRNGKey(0)
    k_x, k_w, k_b, k_g, k_be, k_m, k_v = jax.random.split(key, 7)
    x = jax.random.normal(k_x, (N, C_IN, T, V), dtype=jnp.float32)
    conv_w = 0.1 * jax.random.normal(k_w, (C_OUT, C_IN, KT, 1), jnp.float32)
    conv_b = 0.1 * jax.random.normal(k_b, (C_OUT,), jnp.float32)
    gamma = 1.0 + 0.1 * jax.random.normal(k_g, (C_OUT,), jnp.float32)
    beta = 0.1 * jax.random.normal(k_be, (C_OUT,), jnp.float32)
    run_mean = 0.1 * jax.random.normal(k_m, (C_OUT,), jnp.float32)
    run_var = 1.0 + 0.1 * jnp.abs(jax.random.normal(k_v, (C_OUT,), jnp.float32))

    # Reference uses the same bf16 operand quantization as the kernel's MXU
    # inputs (f32 accumulation); the kernel output itself is bf16.
    x_q = x.astype(jnp.bfloat16).astype(jnp.float32)
    w_q = conv_w.astype(jnp.bfloat16).astype(jnp.float32)

    # stride=2 exercises the phase-slab path; stride=1 the zero-copy path.
    for STRIDE in (2, 1):
        out = temporal_conv_forward(x, conv_w, conv_b, gamma, beta,
                                    run_mean, run_var,
                                    stride=STRIDE, dilation=DIL)
        out = jax.block_until_ready(out).astype(jnp.float32)
        ref = _reference(x_q, w_q, conv_b, gamma, beta, run_mean, run_var,
                         stride=STRIDE, dilation=DIL)
        assert out.shape == ref.shape, (STRIDE, out.shape, ref.shape)
        max_err = float(jnp.max(jnp.abs(out - ref)))
        assert jnp.allclose(out, ref, atol=2e-2, rtol=2e-2), (STRIDE, max_err)

    print("KERNEL_OK")
</pallas_src>

<mosaic_0001>
module attributes {stable_mosaic.version = 11 : i64} {
  func.func @kernel(%arg0: i32, %arg1: memref<1x2x4x384xbf16, #tpu.memory_space<vmem>>, %arg2: memref<8x20xbf16, #tpu.memory_space<vmem>>, %arg3: memref<8x1xf32, #tpu.memory_space<vmem>>, %arg4: memref<8x1xf32, #tpu.memory_space<vmem>>, %arg5: memref<1x8x256xbf16, #tpu.memory_space<vmem>>) attributes {dimension_semantics = [#tpu.dimension_semantics<parallel>], iteration_bounds = array<i64: 2>, scalar_prefetch = 0 : i64, scratch_operands = 0 : i64, tpu.core_type = #tpu.core_type<tc>, window_params = [{transform_indices = @transform_0, window_bounds = array<i64: 1, 2, 4, 384>}, {pipeline_mode = #tpu.pipeline_mode<synchronous>, transform_indices = @transform_1, window_bounds = array<i64: 8, 20>}, {pipeline_mode = #tpu.pipeline_mode<synchronous>, transform_indices = @transform_2, window_bounds = array<i64: 8, 1>}, {pipeline_mode = #tpu.pipeline_mode<synchronous>, transform_indices = @transform_3, window_bounds = array<i64: 8, 1>}, {transform_indices = @transform_4, window_bounds = array<i64: 1, 8, 256>}]} {
    %c0 = arith.constant 0 : index
    %c0_0 = arith.constant 0 : index
    %c0_1 = arith.constant 0 : index
    %c0_2 = arith.constant 0 : index
    %0 = vector.load %arg1[%c0, %c0_0, %c0_1, %c0_2] : memref<1x2x4x384xbf16, #tpu.memory_space<vmem>>, vector<1x1x4x256xbf16>
    %1 = vector.shape_cast %0 : vector<1x1x4x256xbf16> to vector<4x256xbf16>
    %c0_3 = arith.constant 0 : index
    %c0_4 = arith.constant 0 : index
    %2 = vector.load %arg2[%c0_3, %c0_4] : memref<8x20xbf16, #tpu.memory_space<vmem>>, vector<8x4xbf16>
    %cst = arith.constant dense<0.000000e+00> : vector<8x256xf32>
    %3 = tpu.matmul %2, %1, %cst {dimension_numbers = #tpu.dot_dimension_numbers<[1], [0], [0], [1], [0, 0, 1, 1], [], []>} : vector<8x4xbf16>, vector<4x256xbf16>, vector<8x256xf32> -> vector<8x256xf32>
    %c0_5 = arith.constant 0 : index
    %c1 = arith.constant 1 : index
    %c0_6 = arith.constant 0 : index
    %c0_7 = arith.constant 0 : index
    %4 = vector.load %arg1[%c0_5, %c1, %c0_6, %c0_7] : memref<1x2x4x384xbf16, #tpu.memory_space<vmem>>, vector<1x1x4x256xbf16>
    %5 = vector.shape_cast %4 : vector<1x1x4x256xbf16> to vector<4x256xbf16>
    %c0_8 = arith.constant 0 : index
    %c4 = arith.constant 4 : index
    %6 = vector.load %arg2[%c0_8, %c4] : memref<8x20xbf16, #tpu.memory_space<vmem>>, vector<8x4xbf16>
    %cst_9 = arith.constant dense<0.000000e+00> : vector<8x256xf32>
    %7 = tpu.matmul %6, %5, %cst_9 {dimension_numbers = #tpu.dot_dimension_numbers<[1], [0], [0], [1], [0, 0, 1, 1], [], []>} : vector<8x4xbf16>, vector<4x256xbf16>, vector<8x256xf32> -> vector<8x256xf32>
    %8 = arith.addf %3, %7 : vector<8x256xf32>
    %c0_10 = arith.constant 0 : index
    %c0_11 = arith.constant 0 : index
    %c0_12 = arith.constant 0 : index
    %c20 = arith.constant 20 : index
    %9 = vector.load %arg1[%c0_10, %c0_11, %c0_12, %c20] : memref<1x2x4x384xbf16, #tpu.memory_space<vmem>>, vector<1x1x4x256xbf16>
    %10 = vector.shape_cast %9 : vector<1x1x4x256xbf16> to vector<4x256xbf16>
    %c0_13 = arith.constant 0 : index
    %c8 = arith.constant 8 : index
    %11 = vector.load %arg2[%c0_13, %c8] : memref<8x20xbf16, #tpu.memory_space<vmem>>, vector<8x4xbf16>
    %cst_14 = arith.constant dense<0.000000e+00> : vector<8x256xf32>
    %12 = tpu.matmul %11, %10, %cst_14 {dimension_numbers = #tpu.dot_dimension_numbers<[1], [0], [0], [1], [0, 0, 1, 1], [], []>} : vector<8x4xbf16>, vector<4x256xbf16>, vector<8x256xf32> -> vector<8x256xf32>
    %13 = arith.addf %8, %12 : vector<8x256xf32>
    %c0_15 = arith.constant 0 : index
    %c1_16 = arith.constant 1 : index
    %c0_17 = arith.constant 0 : index
    %c20_18 = arith.constant 20 : index
    %14 = vector.load %arg1[%c0_15, %c1_16, %c0_17, %c20_18] : memref<1x2x4x384xbf16, #tpu.memory_space<vmem>>, vector<1x1x4x256xbf16>
    %15 = vector.shape_cast %14 : vector<1x1x4x256xbf16> to vector<4x256xbf16>
    %c0_19 = arith.constant 0 : index
    %c12 = arith.constant 12 : index
    %16 = vector.load %arg2[%c0_19, %c12] : memref<8x20xbf16, #tpu.memory_space<vmem>>, vector<8x4xbf16>
    %cst_20 = arith.constant dense<0.000000e+00> : vector<8x256xf32>
    %17 = tpu.matmul %16, %15, %cst_20 {dimension_numbers = #tpu.dot_dimension_numbers<[1], [0], [0], [1], [0, 0, 1, 1], [], []>} : vector<8x4xbf16>, vector<4x256xbf16>, vector<8x256xf32> -> vector<8x256xf32>
    %18 = arith.addf %13, %17 : vector<8x256xf32>
    %c0_21 = arith.constant 0 : index
    %c0_22 = arith.constant 0 : index
    %c0_23 = arith.constant 0 : index
    %c40 = arith.constant 40 : index
    %19 = vector.load %arg1[%c0_21, %c0_22, %c0_23, %c40] : memref<1x2x4x384xbf16, #tpu.memory_space<vmem>>, vector<1x1x4x256xbf16>
    %20 = vector.shape_cast %19 : vector<1x1x4x256xbf16> to vector<4x256xbf16>
    %c0_24 = arith.constant 0 : index
    %c16 = arith.constant 16 : index
    %21 = vector.load %arg2[%c0_24, %c16] : memref<8x20xbf16, #tpu.memory_space<vmem>>, vector<8x4xbf16>
    %cst_25 = arith.constant dense<0.000000e+00> : vector<8x256xf32>
    %22 = tpu.matmul %21, %20, %cst_25 {dimension_numbers = #tpu.dot_dimension_numbers<[1], [0], [0], [1], [0, 0, 1, 1], [], []>} : vector<8x4xbf16>, vector<4x256xbf16>, vector<8x256xf32> -> vector<8x256xf32>
    %23 = arith.addf %18, %22 : vector<8x256xf32>
    %c0_26 = arith.constant 0 : index
    %c0_27 = arith.constant 0 : index
    %24 = vector.load %arg3[%c0_26, %c0_27] : memref<8x1xf32, #tpu.memory_space<vmem>>, vector<8x1xf32>
    %25 = vector.broadcast %24 : vector<8x1xf32> to vector<8x256xf32>
    %26 = arith.mulf %23, %25 : vector<8x256xf32>
    %c0_28 = arith.constant 0 : index
    %c0_29 = arith.constant 0 : index
    %27 = vector.load %arg4[%c0_28, %c0_29] : memref<8x1xf32, #tpu.memory_space<vmem>>, vector<8x1xf32>
    %28 = vector.broadcast %27 : vector<8x1xf32> to vector<8x256xf32>
    %29 = arith.addf %26, %28 : vector<8x256xf32>
    %30 = arith.truncf %29 : vector<8x256xf32> to vector<8x256xbf16>
    %c0_30 = arith.constant 0 : index
    %c0_31 = arith.constant 0 : index
    %c0_32 = arith.constant 0 : index
    %31 = vector.load %arg5[%c0_30, %c0_31, %c0_32] : memref<1x8x256xbf16, #tpu.memory_space<vmem>>, vector<1x8x256xbf16>
    %32 = vector.shape_cast %31 : vector<1x8x256xbf16> to vector<8x256xbf16>
    %33 = vector.shape_cast %30 : vector<8x256xbf16> to vector<1x8x256xbf16>
    tpu.vector_store %arg5[%c0_30, %c0_31, %c0_32], %33 {strides = array<i32>} : memref<1x8x256xbf16, #tpu.memory_space<vmem>>, vector<1x8x256xbf16>,
    return
  }
  func.func @transform_0(%arg0: i32) -> (i32, i32, i32, i32) {
    %c0_i32 = arith.constant 0 : i32
    %c0_i32_0 = arith.constant 0 : i32
    %c0_i32_1 = arith.constant 0 : i32
    %c0_i32_2 = arith.constant 0 : i32
    return %arg0, %c0_i32, %c0_i32_0, %c0_i32_1 : i32, i32, i32, i32
  }
  func.func @transform_1(%arg0: i32) -> (i32, i32) {
    %c0_i32 = arith.constant 0 : i32
    %c0_i32_0 = arith.constant 0 : i32
    %c0_i32_1 = arith.constant 0 : i32
    return %c0_i32, %c0_i32_0 : i32, i32
  }
  func.func @transform_2(%arg0: i32) -> (i32, i32) {
    %c0_i32 = arith.constant 0 : i32
    %c0_i32_0 = arith.constant 0 : i32
    %c0_i32_1 = arith.constant 0 : i32
    return %c0_i32, %c0_i32_0 : i32, i32
  }
  func.func @transform_3(%arg0: i32) -> (i32, i32) {
    %c0_i32 = arith.constant 0 : i32
    %c0_i32_0 = arith.constant 0 : i32
    %c0_i32_1 = arith.constant 0 : i32
    return %c0_i32, %c0_i32_0 : i32, i32
  }
  func.func @transform_4(%arg0: i32) -> (i32, i32, i32) {
    %c0_i32 = arith.constant 0 : i32
    %c0_i32_0 = arith.constant 0 : i32
    %c0_i32_1 = arith.constant 0 : i32
    return %arg0, %c0_i32, %c0_i32_0 : i32, i32, i32
  }
}

</mosaic_0001>

<llo_original>
// kernel: tpu_custom_call.1
$region0: #{tpu_custom_call.1}
  #allocation0 [shape = 'u32[]', space=smem, size = 0x4, offset = 0x4, fixed_abs, tag = 'smem constant byte address 0x4 - core index']
  #allocation1 [shape = 'u32[144,128]{1,0:T(1,128)}', space=vmem, size = 0x12000, scoped, tag = 'internal scratch']
  %s0 = inlined_call_operand.hbm [shape: bf16[2,2,4,384], index: 0, kind: input, shape index: {}]
  %s1 = inlined_call_operand.vmem [shape: bf16[8,20], index: 1, kind: input, shape index: {}]
  %s2 = inlined_call_operand.vmem [shape: f32[8,1], index: 2, kind: input, shape index: {}]
  %s3 = inlined_call_operand.vmem [shape: f32[8,1], index: 3, kind: input, shape index: {}]
  %s4 = inlined_call_operand.hbm [shape: bf16[2,8,256], index: 4, kind: output, shape index: {}]
  %s5 = sld [smem:[#allocation0]]
  $region53: #{tpu_custom_call.1} parent=0
    _
  %s7 = ssub.s32 1, %s5
  %s8 = scalar_select 0, %s7, %s5
  $region1: #{tpu_custom_call.1} parent=0
    #allocation2 [shape = 'u8[12288]{0}', space=vmem, size = 0x3000, scoped, tag = 'input window, operand 0']
    #allocation3 [shape = 's32[2]{0}', space=sflag, size = 0x8, scoped, tag = 'scoped memory for tpu_custom_call.1']
    #allocation4 [shape = 's32[2]{0}', space=sflag, size = 0x8, scoped, tag = 'scoped memory for tpu_custom_call.1']
    #allocation5 [shape = 'u8[8192]{0}', space=vmem, size = 0x2000, scoped, tag = 'output window, operand 0']
    %9 = vsyncpa [#allocation3], 0
    %s10 = scalar_lea.sflag [#allocation3], 1
    %11 = vsyncpa %s10, 0
    %12 = vsyncpa [#allocation4], 0
    %s13 = scalar_lea.sflag [#allocation4], 1
    %14 = vsyncpa %s13, 0
    loop: start=0, step=1, limit=4
    $region2: #{tpu_custom_call.1} parent=1 // loop_pre_header
      _
    $region3: #{tpu_custom_call.1} parent=1 // loop_header
      %s16 = sphi 0, %s20
      %p17 = scmp.ge.s32.totalorder %s16, 4
      %s26 = sphi 0, %s28
      %s29 = sphi 0, %s26
      %s30 = sphi 0, %s29
      %s46 = sphi 0, %s30
      %s50 = sphi 0, %s50
      %s52 = sphi 0, %s50
      %s53 = sphi 0, %s52
      %s67 = sphi 0, %s53
      %s71 = sphi 0, %s71
      %s73 = sphi 0, %s71
      %s74 = sphi 0, %s73
      %s88 = sphi 0, %s74
      %s92 = sphi 0, %s92
      %s94 = sphi 0, %s92
      %s95 = sphi 0, %s94
      %s109 = sphi 0, %s95
      %s115 = sphi 0, %s117
      %s118 = sphi 0, %s115
      %s119 = sphi 0, %s118
      %s135 = sphi 0, %s119
    $region4: #{tpu_custom_call.1} parent=1 // loop_header_branch
      %19 = sbr.rel (%p17) target = $region8
    $region5: #{tpu_custom_call.1} parent=1 // loop_body
      %s21 = ssub.s32 %s16, 1
      %s22 = ssub.s32 %s16, 2
      %s23 = sadd.s32 %s16, 1
      %s24 = ssub.s32 %s16, %s23
      %p25 = scmp.eq.s32.totalorder %s24, 0
      %s27 = sadd.s32 %s26, 1
      %s28 = scalar_select %p25, %s26, %s27
      %p31 = pneg %p25
      %p32 = scmp.eq.s32.totalorder %s16, 1
      %p33 = por %p31, %p32
      %p34 = scmp.ne.s32.totalorder %s26, %s29
      %p35 = scmp.eq.s32.totalorder %s16, 0
      %p36 = por %p34, %p35
      %p37 = scmp.ne.s32.totalorder %s26, %s29
      %p38 = scmp.eq.s32.totalorder %s21, 1
      %p39 = por %p37, %p38
      %p40 = scmp.ne.s32.totalorder %s29, %s30
      %p41 = scmp.eq.s32.totalorder %s21, 0
      %p42 = por %p40, %p41
      %p43 = scmp.ne.s32.totalorder %s29, %s30
      %p44 = scmp.eq.s32.totalorder %s22, 1
      %p45 = por %p43, %p44
      %p47 = scmp.ne.s32.totalorder %s30, %s46
      %p48 = scmp.eq.s32.totalorder %s22, 0
      %p49 = por %p47, %p48
      %s51 = sadd.s32 %s50, 1
      %p54 = scmp.eq.s32.totalorder %s16, 1
      %p55 = scmp.ne.s32.totalorder %s50, %s52
      %p56 = scmp.eq.s32.totalorder %s16, 0
      %p57 = por %p55, %p56
      %p58 = scmp.ne.s32.totalorder %s50, %s52
      %p59 = scmp.eq.s32.totalorder %s21, 1
      %p60 = por %p58, %p59
      %p61 = scmp.ne.s32.totalorder %s52, %s53
      %p62 = scmp.eq.s32.totalorder %s21, 0
      %p63 = por %p61, %p62
      %p64 = scmp.ne.s32.totalorder %s52, %s53
      %p65 = scmp.eq.s32.totalorder %s22, 1
      %p66 = por %p64, %p65
      %p68 = scmp.ne.s32.totalorder %s53, %s67
      %p69 = scmp.eq.s32.totalorder %s22, 0
      %p70 = por %p68, %p69
      %s72 = sadd.s32 %s71, 1
      %p75 = scmp.eq.s32.totalorder %s16, 1
      %p76 = scmp.ne.s32.totalorder %s71, %s73
      %p77 = scmp.eq.s32.totalorder %s16, 0
      %p78 = por %p76, %p77
      %p79 = scmp.ne.s32.totalorder %s71, %s73
      %p80 = scmp.eq.s32.totalorder %s21, 1
      %p81 = por %p79, %p80
      %p82 = scmp.ne.s32.totalorder %s73, %s74
      %p83 = scmp.eq.s32.totalorder %s21, 0
      %p84 = por %p82, %p83
      %p85 = scmp.ne.s32.totalorder %s73, %s74
      %p86 = scmp.eq.s32.totalorder %s22, 1
      %p87 = por %p85, %p86
      %p89 = scmp.ne.s32.totalorder %s74, %s88
      %p90 = scmp.eq.s32.totalorder %s22, 0
      %p91 = por %p89, %p90
      %s93 = sadd.s32 %s92, 1
      %p96 = scmp.eq.s32.totalorder %s16, 1
      %p97 = scmp.ne.s32.totalorder %s92, %s94
      %p98 = scmp.eq.s32.totalorder %s16, 0
      %p99 = por %p97, %p98
      %p100 = scmp.ne.s32.totalorder %s92, %s94
      %p101 = scmp.eq.s32.totalorder %s21, 1
      %p102 = por %p100, %p101
      %p103 = scmp.ne.s32.totalorder %s94, %s95
      %p104 = scmp.eq.s32.totalorder %s21, 0
      %p105 = por %p103, %p104
      %p106 = scmp.ne.s32.totalorder %s94, %s95
      %p107 = scmp.eq.s32.totalorder %s22, 1
      %p108 = por %p106, %p107
      %p110 = scmp.ne.s32.totalorder %s95, %s109
      %p111 = scmp.eq.s32.totalorder %s22, 0
      %p112 = por %p110, %p111
      %s113 = ssub.s32 %s16, %s23
      %p114 = scmp.eq.s32.totalorder %s113, 0
      %s116 = sadd.s32 %s115, 1
      %s117 = scalar_select %p114, %s115, %s116
      %p120 = pneg %p114
      %p121 = scmp.eq.s32.totalorder %s16, 1
      %p122 = por %p120, %p121
      %p123 = scmp.ne.s32.totalorder %s115, %s118
      %p124 = scmp.eq.s32.totalorder %s16, 0
      %p125 = por %p123, %p124
      %p126 = scmp.ne.s32.totalorder %s115, %s118
      %p127 = scmp.eq.s32.totalorder %s21, 1
      %p128 = por %p126, %p127
      %p129 = scmp.ne.s32.totalorder %s118, %s119
      %p130 = scmp.eq.s32.totalorder %s21, 0
      %p131 = por %p129, %p130
      %p132 = scmp.ne.s32.totalorder %s118, %s119
      %p133 = scmp.eq.s32.totalorder %s22, 1
      %p134 = por %p132, %p133
      %p136 = scmp.ne.s32.totalorder %s119, %s135
      %p137 = scmp.eq.s32.totalorder %s22, 0
      %p138 = por %p136, %p137
      %p139 = scmp.le.s32.totalorder 1, %s16
      %p140 = scmp.lt.s32.totalorder %s16, 3
      %p141 = pnand %p139, %p140
      %p142 = pneg %p141
      // Predicated region
      $region9: #{tpu_custom_call.1} parent=5 // pred_check
        _
      $region10: #{tpu_custom_call.1} parent=5 // pred_check_branch
        %144 = sbr.rel (%p141) target = $region12
      $region11: #{tpu_custom_call.1} parent=5 // pred_region
        %s145 = ssub.s32 %s16, 1
        // Predicated region
        $region13: #{tpu_custom_call.1} parent=11 // pred_check
          %p146 = pneg %p63
        $region14: #{tpu_custom_call.1} parent=11 // pred_check_branch
          %148 = sbr.rel (%p146) target = $region16
        $region15: #{tpu_custom_call.1} parent=11 // pred_region
          _
        $region16: #{tpu_custom_call.1} parent=11 // pred_fallthru
          _
        // Predicated region
        $region17: #{tpu_custom_call.1} parent=11 // pred_check
          %p149 = pneg %p84
        $region18: #{tpu_custom_call.1} parent=11 // pred_check_branch
          %151 = sbr.rel (%p149) target = $region20
        $region19: #{tpu_custom_call.1} parent=11 // pred_region
          _
        $region20: #{tpu_custom_call.1} parent=11 // pred_fallthru
          _
        // Predicated region
        $region21: #{tpu_custom_call.1} parent=11 // pred_check
          %p152 = pneg %p105
        $region22: #{tpu_custom_call.1} parent=11 // pred_check_branch
          %154 = sbr.rel (%p152) target = $region24
        $region23: #{tpu_custom_call.1} parent=11 // pred_region
          _
        $region24: #{tpu_custom_call.1} parent=11 // pred_fallthru
          _
      $region12: #{tpu_custom_call.1} parent=5 // pred_fallthru
        _
      %p155 = scmp.lt.s32.totalorder %s16, 2
      // Predicated region
      $region25: #{tpu_custom_call.1} parent=5 // pred_check
        %p156 = pneg %p155
      $region26: #{tpu_custom_call.1} parent=5 // pred_check_branch
        %158 = sbr.rel (%p156) target = $region28
      $region27: #{tpu_custom_call.1} parent=5 // pred_region
        // Predicated region
        $region29: #{tpu_custom_call.1} parent=27 // pred_check
          %p159 = pneg %p36
        $region30: #{tpu_custom_call.1} parent=27 // pred_check_branch
          %161 = sbr.rel (%p159) target = $region32
        $region31: #{tpu_custom_call.1} parent=27 // pred_region
          %s162 = sand.u32 %s26, 1
          %s163 = scalar_lea.sflag [#allocation3], %s162
          %s164 = sand.u32 %s26, 1
          %s165 = smul.addr %s164, 12
          %s166 = scalar_lea.vmem [#allocation2], %s165
          %s168 = ssub.s32 192, 192
          %169 = vsyncadd %s163, %s168
          %s170 = smul.addr %s16, 6
          %s171 = smul.addr %s170, 32
          %s172 = scalar_lea.hbm %s0, %s171
          %s173 = sshll.u32 %s166, 4
          %s174 = int_to_ptr.vmem [resolvable:$true] %s173
          %179 = dma.hbm_to_vmem [thread:$0]  %s172, 192, %s174, %s163, 96, 96, 6
        $region32: #{tpu_custom_call.1} parent=27 // pred_fallthru
          _
      $region28: #{tpu_custom_call.1} parent=5 // pred_fallthru
        _
      %p180 = scmp.le.s32.totalorder 1, %s16
      %p181 = scmp.lt.s32.totalorder %s16, 3
      %p182 = pnand %p180, %p181
      %p183 = pneg %p182
      // Predicated region
      $region33: #{tpu_custom_call.1} parent=5 // pred_check
        _
      $region34: #{tpu_custom_call.1} parent=5 // pred_check_branch
        %185 = sbr.rel (%p182) target = $region36
      $region35: #{tpu_custom_call.1} parent=5 // pred_region
        %s186 = ssub.s32 %s16, 1
        %s187 = sand.u32 %s29, 1
        %s188 = scalar_lea.sflag [#allocation3], %s187
        %s189 = sand.u32 %s29, 1
        %s190 = smul.addr %s189, 12
        %s191 = scalar_lea.vmem [#allocation2], %s190
        // Predicated region
        $region37: #{tpu_custom_call.1} parent=35 // pred_check
          %p192 = pneg %p42
        $region38: #{tpu_custom_call.1} parent=35 // pred_check_branch
          %194 = sbr.rel (%p192) target = $region40
        $region39: #{tpu_custom_call.1} parent=35 // pred_region
          %195 = dma.done %s188, 192
        $region40: #{tpu_custom_call.1} parent=35 // pred_fallthru
          _
        %s196 = sand.u32 %s29, 1
        %s197 = scalar_lea.sflag [#allocation3], %s196
        %s198 = sand.u32 %s29, 1
        %s199 = smul.addr %s198, 12
        %s200 = scalar_lea.vmem [#allocation2], %s199
        %p201 = pneg %p42
        %p202 = pneg %p39
        %p203 = pneg %p63
        %p204 = pneg %p60
        %p205 = pneg %p84
        %p206 = pneg %p81
        %p207 = pneg %p105
        %p208 = pneg %p102
        %p209 = pneg %p131
        %p210 = pneg %p128
        %s211 = sand.u32 %s118, 1
        %s212 = scalar_lea.sflag [#allocation4], %s211
        %s213 = sand.u32 %s118, 1
        %s214 = smul.addr %s213, 8
        %s215 = scalar_lea.vmem [#allocation5], %s214
        %v217 = vld [vmem:[%s191] sm:$0xf]
        %v218 = vld [vmem:[%s1] sm:$0xf]
        %s219 = scalar_lea.vmem %s191, 6 [#allocation2]
        %v220 = vld [vmem:[%s219] sm:$0xf]
        %v222 = vunpack.c.l.b16 %v218
        %v223 = vpack.c.b16 %v222, %v222
        %224 = vrot.lane.b32.xlu0 %v223, 124
        %v225 = vpop.permute.xlu0 %224
        %v228 = vunpack.c.l.s4 1983009808
        %v229 = vunpack.c.0.s8 %v228
        %v230 = vlaneseq
        %v231 = vshrl.u32 %v230, 7
        %v232 = vsub.s32 %v229, %v231
        %v233 = vrot.slane %v220, %v232
        %v234 = vcombine.high %v233, %v233
        %vm235 = vcmask 31744
        %v237 = vsel %vm235, %v225, 0
        %vm239 = vcmask 1041408
        %v241 = vsel %vm239, %v233, 0
        %v244 = vsel %vm239, %v234, 0
        %246 = vmatprep.subr.bf16.mxu0 0
        %247 = vmatpush1.bf16.msra.mxu0 0
        %248 = vmatprep.subr.bf16.mxu0 0
        %249 = vmatpush1.bf16.msra.mxu0 0
        %250 = vmatprep.subr.bf16.mxu0 0
        %251 = vmatpush1.bf16.msra.mxu0 0
        %252 = vmatprep.subr.bf16.mxu0 0
        %253 = vmatpush1.bf16.msra.mxu0 0
        %254 = vmatprep.subr.bf16.mxu0 0
        %255 = vmatpush1.bf16.msra.mxu0 0
        %256 = vmatprep.subr.bf16.mxu0 0
        %257 = vmatpush1.bf16.msra.mxu0 0
        %258 = vmatprep.subr.bf16.mxu0 0
        %259 = vmatpush1.bf16.msra.mxu0 0
        %260 = vmatprep.subr.bf16.mxu0 %v244
        %261 = vmatpush1.bf16.msra.mxu0 %v241
        %262 = vmatprep.subr.bf16.mxu0 0
        %263 = vmatpush2.bf16.msra.mxu0 0
        %264 = vmatprep.subr.bf16.mxu0 0
        %265 = vmatpush2.bf16.msra.mxu0 0
        %266 = vmatprep.subr.bf16.mxu0 0
        %267 = vmatpush2.bf16.msra.mxu0 0
        %268 = vmatprep.subr.bf16.mxu0 0
        %269 = vmatpush2.bf16.msra.mxu0 0
        %270 = vmatprep.subr.bf16.mxu0 0
        %271 = vmatpush2.bf16.msra.mxu0 0
        %272 = vmatprep.subr.bf16.mxu0 0
        %273 = vmatpush2.bf16.msra.mxu0 0
        %274 = vmatprep.subr.bf16.mxu0 0
        %275 = vmatpush2.bf16.msra.mxu0 0
        %276 = vmatprep.subr.bf16.mxu0 0
        %277 = vmatpush2.bf16.msra.mxu0 0
        %278 = vmatprep.mubr.bf16.mxu0 0
        %279 = vmatmul.mubr.bf16.gmra.mxu0 %v237
        %v280 = vpop.f32.mrf.mxu0
        %v281 = vadd.f32 0.0, %v280
        %v282 = vpop.f32.mrf.mxu0
        %v283 = vadd.f32 0.0, %v282
        %v284 = vpop.f32.mrf.mxu0
        %v285 = vpop.f32.mrf.mxu0
        %286 = vdwg.mxu0
        %v289 = vunpack.c.l.s4 1983009808
        %v290 = vunpack.c.0.s8 %v289
        %v291 = vlaneseq
        %v292 = vshrl.u32 %v291, 7
        %v293 = vsub.s32 %v290, %v292
        %v294 = vrot.slane %v217, %v293
        %v295 = vcombine.high %v294, %v294
        %v297 = vsel %vm235, %v218, 0
        %v300 = vsel %vm239, %v294, 0
        %v303 = vsel %vm239, %v295, 0
        %305 = vmatprep.subr.bf16.mxu0 0
        %306 = vmatpush1.bf16.msra.mxu0 0
        %307 = vmatprep.subr.bf16.mxu0 0
        %308 = vmatpush1.bf16.msra.mxu0 0
        %309 = vmatprep.subr.bf16.mxu0 0
        %310 = vmatpush1.bf16.msra.mxu0 0
        %311 = vmatprep.subr.bf16.mxu0 0
        %312 = vmatpush1.bf16.msra.mxu0 0
        %313 = vmatprep.subr.bf16.mxu0 0
        %314 = vmatpush1.bf16.msra.mxu0 0
        %315 = vmatprep.subr.bf16.mxu0 0
        %316 = vmatpush1.bf16.msra.mxu0 0
        %317 = vmatprep.subr.bf16.mxu0 0
        %318 = vmatpush1.bf16.msra.mxu0 0
        %319 = vmatprep.subr.bf16.mxu0 %v303
        %320 = vmatpush1.bf16.msra.mxu0 %v300
        %321 = vmatprep.subr.bf16.mxu0 0
        %322 = vmatpush2.bf16.msra.mxu0 0
        %323 = vmatprep.subr.bf16.mxu0 0
        %324 = vmatpush2.bf16.msra.mxu0 0
        %325 = vmatprep.subr.bf16.mxu0 0
        %326 = vmatpush2.bf16.msra.mxu0 0
        %327 = vmatprep.subr.bf16.mxu0 0
        %328 = vmatpush2.bf16.msra.mxu0 0
        %329 = vmatprep.subr.bf16.mxu0 0
        %330 = vmatpush2.bf16.msra.mxu0 0
        %331 = vmatprep.subr.bf16.mxu0 0
        %332 = vmatpush2.bf16.msra.mxu0 0
        %333 = vmatprep.subr.bf16.mxu0 0
        %334 = vmatpush2.bf16.msra.mxu0 0
        %335 = vmatprep.subr.bf16.mxu0 0
        %336 = vmatpush2.bf16.msra.mxu0 0
        %337 = vmatprep.mubr.bf16.mxu0 0
        %338 = vmatmul.mubr.bf16.gmra.mxu0 %v297
        %v339 = vpop.f32.mrf.mxu0
        %v340 = vadd.f32 %v281, %v339
        %v341 = vpop.f32.mrf.mxu0
        %v342 = vadd.f32 %v283, %v341
        %v343 = vpop.f32.mrf.mxu0
        %v344 = vpop.f32.mrf.mxu0
        %345 = vdwg.mxu0
        %v346 = vld [vmem:[%s191] sm:$0x3f]
        %v347 = vld [vmem:[%s1] sm:$0xf]
        %v349 = vunpack.c.l.b16 %v347
        %v350 = vpack.c.b16 %v349, %v349
        %351 = vrot.lane.b32.xlu0 %v350, 120
        %v352 = vpop.permute.xlu0 %351
        %v354 = vcombine.high %v346, %v346
        %v356 = vunpack.c.l.s4 1983009808
        %v357 = vunpack.c.0.s8 %v356
        %v358 = vlaneseq
        %v359 = vshrl.u32 %v358, 7
        %v360 = vsub.s32 %v357, %v359
        %v361 = vrot.slane %v346, %v360
        %v363 = vunpack.c.l.s4 1983009808
        %v364 = vunpack.c.0.s8 %v363
        %v365 = vlaneseq
        %v366 = vshrl.u32 %v365, 7
        %v367 = vsub.s32 %v364, %v366
        %v368 = vrot.slane %v354, %v367
        %v369 = vcombine.high %v361, %v361
        %370 = vrot.lane.b32.xlu0 %v361, 108
        %v371 = vpop.permute.xlu0 %370
        %372 = vrot.lane.b32.xlu0 %v369, 108
        %v373 = vpop.permute.xlu0 %372
        %374 = vrot.lane.b32.xlu0 %v368, 108
        %v375 = vpop.permute.xlu0 %374
        %vm376 = vcmask 883712
        %v377 = vsel %vm376, %v371, %v373
        %v378 = vsel %vm376, %v373, %v375
        %v380 = vsel %vm235, %v352, 0
        %v383 = vsel %vm239, %v377, 0
        %v386 = vsel %vm239, %v378, 0
        %388 = vmatprep.subr.bf16.mxu0 0
        %389 = vmatpush1.bf16.msra.mxu0 0
        %390 = vmatprep.subr.bf16.mxu0 0
        %391 = vmatpush1.bf16.msra.mxu0 0
        %392 = vmatprep.subr.bf16.mxu0 0
        %393 = vmatpush1.bf16.msra.mxu0 0
        %394 = vmatprep.subr.bf16.mxu0 0
        %395 = vmatpush1.bf16.msra.mxu0 0
        %396 = vmatprep.subr.bf16.mxu0 0
        %397 = vmatpush1.bf16.msra.mxu0 0
        %398 = vmatprep.subr.bf16.mxu0 0
        %399 = vmatpush1.bf16.msra.mxu0 0
        %400 = vmatprep.subr.bf16.mxu0 0
        %401 = vmatpush1.bf16.msra.mxu0 0
        %402 = vmatprep.subr.bf16.mxu0 %v386
        %403 = vmatpush1.bf16.msra.mxu0 %v383
        %404 = vmatprep.subr.bf16.mxu0 0
        %405 = vmatpush2.bf16.msra.mxu0 0
        %406 = vmatprep.subr.bf16.mxu0 0
        %407 = vmatpush2.bf16.msra.mxu0 0
        %408 = vmatprep.subr.bf16.mxu0 0
        %409 = vmatpush2.bf16.msra.mxu0 0
        %410 = vmatprep.subr.bf16.mxu0 0
        %411 = vmatpush2.bf16.msra.mxu0 0
        %412 = vmatprep.subr.bf16.mxu0 0
        %413 = vmatpush2.bf16.msra.mxu0 0
        %414 = vmatprep.subr.bf16.mxu0 0
        %415 = vmatpush2.bf16.msra.mxu0 0
        %416 = vmatprep.subr.bf16.mxu0 0
        %417 = vmatpush2.bf16.msra.mxu0 0
        %418 = vmatprep.subr.bf16.mxu0 0
        %419 = vmatpush2.bf16.msra.mxu0 0
        %420 = vmatprep.mubr.bf16.mxu0 0
        %421 = vmatmul.mubr.bf16.gmra.mxu0 %v380
        %v422 = vpop.f32.mrf.mxu0
        %v423 = vadd.f32 0.0, %v422
        %v424 = vpop.f32.mrf.mxu0
        %v425 = vadd.f32 0.0, %v424
        %v426 = vpop.f32.mrf.mxu0
        %v427 = vpop.f32.mrf.mxu0
        %428 = vdwg.mxu0
        %v429 = vadd.f32 %v340, %v423
        %v430 = vadd.f32 %v342, %v425
        %v431 = vld [vmem:[%s219] sm:$0x3f]
        %v432 = vld [vmem:[%s1] sm:$0xf]
        %v434 = vunpack.c.l.b16 %v432
        %v435 = vpack.c.b16 %v434, %v434
        %436 = vrot.lane.b32.xlu0 %v435, 116
        %v437 = vpop.permute.xlu0 %436
        %v439 = vcombine.high %v431, %v431
        %v441 = vunpack.c.l.s4 1983009808
        %v442 = vunpack.c.0.s8 %v441
        %v443 = vlaneseq
        %v444 = vshrl.u32 %v443, 7
        %v445 = vsub.s32 %v442, %v444
        %v446 = vrot.slane %v431, %v445
        %v448 = vunpack.c.l.s4 1983009808
        %v449 = vunpack.c.0.s8 %v448
        %v450 = vlaneseq
        %v451 = vshrl.u32 %v450, 7
        %v452 = vsub.s32 %v449, %v451
        %v453 = vrot.slane %v439, %v452
        %v454 = vcombine.high %v446, %v446
        %455 = vrot.lane.b32.xlu0 %v446, 108
        %v456 = vpop.permute.xlu0 %455
        %457 = vrot.lane.b32.xlu0 %v454, 108
        %v458 = vpop.permute.xlu0 %457
        %459 = vrot.lane.b32.xlu0 %v453, 108
        %v460 = vpop.permute.xlu0 %459
        %v461 = vsel %vm376, %v456, %v458
        %v462 = vsel %vm376, %v458, %v460
        %v464 = vsel %vm235, %v437, 0
        %v467 = vsel %vm239, %v461, 0
        %v470 = vsel %vm239, %v462, 0
        %472 = vmatprep.subr.bf16.mxu0 0
        %473 = vmatpush1.bf16.msra.mxu0 0
        %474 = vmatprep.subr.bf16.mxu0 0
        %475 = vmatpush1.bf16.msra.mxu0 0
        %476 = vmatprep.subr.bf16.mxu0 0
        %477 = vmatpush1.bf16.msra.mxu0 0
        %478 = vmatprep.subr.bf16.mxu0 0
        %479 = vmatpush1.bf16.msra.mxu0 0
        %480 = vmatprep.subr.bf16.mxu0 0
        %481 = vmatpush1.bf16.msra.mxu0 0
        %482 = vmatprep.subr.bf16.mxu0 0
        %483 = vmatpush1.bf16.msra.mxu0 0
        %484 = vmatprep.subr.bf16.mxu0 0
        %485 = vmatpush1.bf16.msra.mxu0 0
        %486 = vmatprep.subr.bf16.mxu0 %v470
        %487 = vmatpush1.bf16.msra.mxu0 %v467
        %488 = vmatprep.subr.bf16.mxu0 0
        %489 = vmatpush2.bf16.msra.mxu0 0
        %490 = vmatprep.subr.bf16.mxu0 0
        %491 = vmatpush2.bf16.msra.mxu0 0
        %492 = vmatprep.subr.bf16.mxu0 0
        %493 = vmatpush2.bf16.msra.mxu0 0
        %494 = vmatprep.subr.bf16.mxu0 0
        %495 = vmatpush2.bf16.msra.mxu0 0
        %496 = vmatprep.subr.bf16.mxu0 0
        %497 = vmatpush2.bf16.msra.mxu0 0
        %498 = vmatprep.subr.bf16.mxu0 0
        %499 = vmatpush2.bf16.msra.mxu0 0
        %500 = vmatprep.subr.bf16.mxu0 0
        %501 = vmatpush2.bf16.msra.mxu0 0
        %502 = vmatprep.subr.bf16.mxu0 0
        %503 = vmatpush2.bf16.msra.mxu0 0
        %504 = vmatprep.mubr.bf16.mxu0 0
        %505 = vmatmul.mubr.bf16.gmra.mxu0 %v464
        %v506 = vpop.f32.mrf.mxu0
        %v507 = vadd.f32 0.0, %v506
        %v508 = vpop.f32.mrf.mxu0
        %v509 = vadd.f32 0.0, %v508
        %v510 = vpop.f32.mrf.mxu0
        %v511 = vpop.f32.mrf.mxu0
        %512 = vdwg.mxu0
        %v513 = vadd.f32 %v429, %v507
        %v514 = vadd.f32 %v430, %v509
        %v515 = vld [vmem:[%s191] sm:$0x3f]
        %v516 = vld [vmem:[%s1] sm:$0xf]
        %v518 = vunpack.c.l.b16 %v516
        %v519 = vpack.c.b16 %v518, %v518
        %520 = vrot.lane.b32.xlu0 %v519, 112
        %v521 = vpop.permute.xlu0 %520
        %v523 = vcombine.high %v515, %v515
        %v525 = vunpack.c.l.s4 1983009808
        %v526 = vunpack.c.0.s8 %v525
        %v527 = vlaneseq
        %v528 = vshrl.u32 %v527, 7
        %v529 = vsub.s32 %v526, %v528
        %v530 = vrot.slane %v515, %v529
        %v532 = vunpack.c.l.s4 1983009808
        %v533 = vunpack.c.0.s8 %v532
        %v534 = vlaneseq
        %v535 = vshrl.u32 %v534, 7
        %v536 = vsub.s32 %v533, %v535
        %v537 = vrot.slane %v523, %v536
        %v538 = vcombine.high %v530, %v530
        %539 = vrot.lane.b32.xlu0 %v530, 88
        %v540 = vpop.permute.xlu0 %539
        %541 = vrot.lane.b32.xlu0 %v538, 88
        %v542 = vpop.permute.xlu0 %541
        %543 = vrot.lane.b32.xlu0 %v537, 88
        %v544 = vpop.permute.xlu0 %543
        %vm545 = vcmask 719872
        %v546 = vsel %vm545, %v540, %v542
        %v547 = vsel %vm545, %v542, %v544
        %v549 = vsel %vm235, %v521, 0
        %v552 = vsel %vm239, %v546, 0
        %v555 = vsel %vm239, %v547, 0
        %557 = vmatprep.subr.bf16.mxu0 0
        %558 = vmatpush1.bf16.msra.mxu0 0
        %559 = vmatprep.subr.bf16.mxu0 0
        %560 = vmatpush1.bf16.msra.mxu0 0
        %561 = vmatprep.subr.bf16.mxu0 0
        %562 = vmatpush1.bf16.msra.mxu0 0
        %563 = vmatprep.subr.bf16.mxu0 0
        %564 = vmatpush1.bf16.msra.mxu0 0
        %565 = vmatprep.subr.bf16.mxu0 0
        %566 = vmatpush1.bf16.msra.mxu0 0
        %567 = vmatprep.subr.bf16.mxu0 0
        %568 = vmatpush1.bf16.msra.mxu0 0
        %569 = vmatprep.subr.bf16.mxu0 0
        %570 = vmatpush1.bf16.msra.mxu0 0
        %571 = vmatprep.subr.bf16.mxu0 %v555
        %572 = vmatpush1.bf16.msra.mxu0 %v552
        %573 = vmatprep.subr.bf16.mxu0 0
        %574 = vmatpush2.bf16.msra.mxu0 0
        %575 = vmatprep.subr.bf16.mxu0 0
        %576 = vmatpush2.bf16.msra.mxu0 0
        %577 = vmatprep.subr.bf16.mxu0 0
        %578 = vmatpush2.bf16.msra.mxu0 0
        %579 = vmatprep.subr.bf16.mxu0 0
        %580 = vmatpush2.bf16.msra.mxu0 0
        %581 = vmatprep.subr.bf16.mxu0 0
        %582 = vmatpush2.bf16.msra.mxu0 0
        %583 = vmatprep.subr.bf16.mxu0 0
        %584 = vmatpush2.bf16.msra.mxu0 0
        %585 = vmatprep.subr.bf16.mxu0 0
        %586 = vmatpush2.bf16.msra.mxu0 0
        %587 = vmatprep.subr.bf16.mxu0 0
        %588 = vmatpush2.bf16.msra.mxu0 0
        %589 = vmatprep.mubr.bf16.mxu0 0
        %590 = vmatmul.mubr.bf16.gmra.mxu0 %v549
        %v591 = vpop.f32.mrf.mxu0
        %v592 = vadd.f32 0.0, %v591
        %v593 = vpop.f32.mrf.mxu0
        %v594 = vadd.f32 0.0, %v593
        %v595 = vpop.f32.mrf.mxu0
        %v596 = vpop.f32.mrf.mxu0
        %597 = vdwg.mxu0
        %v598 = vadd.f32 %v513, %v592
        %v599 = vadd.f32 %v514, %v594
        %v600 = vld [vmem:[%s2] sm:$0xff]
        %602 = vset.pattern.permute.xlu0 0
        %603 = vperm.xlu0 %602, %v600
        %v604 = vpop.permute.xlu0 %603
        %v606 = vmul.f32 %v598, %v604
        %v607 = vmul.f32 %v599, %v604
        %v608 = vld [vmem:[%s3] sm:$0xff]
        %610 = vset.pattern.permute.xlu0 0
        %611 = vperm.xlu0 %610, %v608
        %v612 = vpop.permute.xlu0 %611
        %v614 = vadd.f32 %v606, %v612
        %v615 = vadd.f32 %v607, %v612
        %v616 = vpack.c.bf16 %v614, %v614
        %v617 = vpack.c.bf16 %v615, %v615
        %v620 = vunpack.c.l.b16 %v616
        %v621 = vunpack.c.l.b16 %v617
        %v622 = vpack.c.b16 %v621, %v620
        %624 = vst [vmem:[%s215] sm:$0xff] %v622
        %s625 = sand.u32 %s118, 1
        %s626 = scalar_lea.sflag [#allocation4], %s625
        %s627 = sand.u32 %s118, 1
        %s628 = smul.addr %s627, 8
        %s629 = scalar_lea.vmem [#allocation5], %s628
        // Predicated region
        $region41: #{tpu_custom_call.1} parent=35 // pred_check
          %p630 = pneg %p128
        $region42: #{tpu_custom_call.1} parent=35 // pred_check_branch
          %632 = sbr.rel (%p630) target = $region44
        $region43: #{tpu_custom_call.1} parent=35 // pred_region
          %s634 = ssub.s32 128, 128
          %635 = vsyncadd %s626, %s634
          %s636 = smul.addr %s21, 2
          %s637 = smul.addr %s636, 64
          %s638 = scalar_lea.hbm %s4, %s637
          %s640 = sshll.u32 %s629, 4
          %s641 = int_to_ptr.vmem [resolvable:$true] %s640
          %643 = dma.vmem_to_hbm [thread:$0]  %s641, 128, %s638, %s626
        $region44: #{tpu_custom_call.1} parent=35 // pred_fallthru
          _
      $region36: #{tpu_custom_call.1} parent=5 // pred_fallthru
        _
      %p644 = scmp.le.s32.totalorder 2, %s16
      // Predicated region
      $region45: #{tpu_custom_call.1} parent=5 // pred_check
        %p645 = pneg %p644
      $region46: #{tpu_custom_call.1} parent=5 // pred_check_branch
        %647 = sbr.rel (%p645) target = $region48
      $region47: #{tpu_custom_call.1} parent=5 // pred_region
        %s648 = ssub.s32 %s16, 2
        // Predicated region
        $region49: #{tpu_custom_call.1} parent=47 // pred_check
          %p649 = pneg %p134
        $region50: #{tpu_custom_call.1} parent=47 // pred_check_branch
          %651 = sbr.rel (%p649) target = $region52
        $region51: #{tpu_custom_call.1} parent=47 // pred_region
          %s652 = sand.u32 %s119, 1
          %s653 = scalar_lea.sflag [#allocation4], %s652
          %s654 = sand.u32 %s119, 1
          %s655 = smul.addr %s654, 8
          %s656 = scalar_lea.vmem [#allocation5], %s655
          %657 = dma.done %s653, 128
        $region52: #{tpu_custom_call.1} parent=47 // pred_fallthru
          _
      $region48: #{tpu_custom_call.1} parent=5 // pred_fallthru
        _
    $region6: #{tpu_custom_call.1} parent=1 // loop_footer
      %s20 = sadd.s32 1, %s16
    $region7: #{tpu_custom_call.1} parent=1 // loop_footer_branch
      %15 = sbr.rel target = $region3
    $region8: #{tpu_custom_call.1} parent=1 // loop_exit
      _
    %658 = vsyncpa [#allocation3], 1
    %s659 = scalar_lea.sflag [#allocation3], 1
    %660 = vsyncpa %s659, 1
    %661 = vsyncpa [#allocation4], 1
    %s662 = scalar_lea.sflag [#allocation4], 1
    %663 = vsyncpa %s662, 1

</llo_original>
